<compile_context>
chip_gen: v6e
topology: v6e:2x2x1
jax: 0.10.0
libtpu: 0.0.40
codegen_flags: <defaults>
</compile_context>

<pallas_src>
import functools

import jax
import jax.numpy as jnp
from jax.experimental import pallas as pl
from jax.experimental.pallas import tpu as pltpu

LANE = 128  # lane width: padded feature dims are multiples of this


def _round_up(n, m):
    return ((n + m - 1) // m) * m


def _pad_to(x, shape):
    pads = [(0, s - d) for d, s in zip(x.shape, shape)]
    return jnp.pad(x, pads)


def _device_kind():
    try:
        return jax.devices()[0].device_kind.lower()
    except Exception:
        return ""


def _native_mxu_rows():
    kind = _device_kind()
    if "v6" in kind or "v7" in kind or "7x" in kind:
        return 256  # 2x256^2 MXU
    return 128      # v4/v5: 128-row MXU input


def _physical_vmem_bytes():
    kind = _device_kind()
    if "v7" in kind or "7x" in kind:
        return 64 << 20   # v7x: 64 MiB per TC
    return 128 << 20      # v5e / v6e


# ----------------------------- Pallas kernel ------------------------------ #
def _fused_mlp_kernel(*refs, num_linear: int):
    """Fused MLP over one batch tile.

    refs = (x, W_0, b_0, ..., W_{L-1}, b_{L-1}, out)
      x      : (TB, D0_p)     bf16 VMEM block (batch tile)
      W_i    : (Din_i, Dout_i) bf16, pre-transposed, VMEM-resident
      b_i    : (1, Dout_i)    f32
      out    : (TB, Dlast_p)  f32 VMEM block

    Matmuls run with bf16 inputs and f32 accumulation on the MXU; bias-add and
    ReLU run in f32 on the VPU (v5e VPU/EUP have no bf16).  The layer loop is
    statically unrolled: only the current layer's input/output activations are
    needed, but the VMEM budget in the wrapper conservatively counts one slab
    per layer boundary since a static Python loop does not bound live ranges.
    """
    x_ref = refs[0]
    o_ref = refs[-1]
    param_refs = refs[1:-1]

    h = x_ref[...]
    for i in range(num_linear):  # static unroll
        w = param_refs[2 * i][...]
        b = param_refs[2 * i + 1][...]
        acc = jnp.dot(h.astype(w.dtype), w, preferred_element_type=jnp.float32)
        acc = acc + b
        if i != num_linear - 1:
            acc = jnp.maximum(acc, 0.0)  # ReLU on hidden layers only
        h = acc
    o_ref[...] = h.astype(o_ref.dtype)


# ----------------------------- Parameter init ----------------------------- #
def init_perceptron_params(key, input_dim, num_layers, hidden_dim, output_dim,
                           dtype=jnp.float32):
    """Torch-style init (uniform +-1/sqrt(fan_in)); W in torch (out, in) layout."""
    params = []
    prev = input_dim
    dims = [hidden_dim] * num_layers + [output_dim]
    for d in dims:
        key, kw, kb = jax.random.split(key, 3)
        bound = 1.0 / jnp.sqrt(prev)
        w = jax.random.uniform(kw, (d, prev), dtype, minval=-bound, maxval=bound)
        b = jax.random.uniform(kb, (d,), dtype, minval=-bound, maxval=bound)
        params.append((w, b))
        prev = d
    return params


def pack_params(params, input_dim, matmul_dtype=jnp.bfloat16):
    """One-time repack: transpose W to (in, out), cast to bf16, zero-pad the
    input feature dim and the FINAL output dim to 128 lanes (lane-dense x DMA
    and lane-dense output stores).  Hidden dims are kept logical so small
    hidden layers don't waste MXU columns.  Biases stay f32.

    Returns (packed, logical_dims) with logical_dims = [(d_in, d_out), ...].
    """
    num = len(params)
    packed = []
    logical_dims = []
    prev_p = _round_up(input_dim, LANE)
    for li, (w, b) in enumerate(params):
        d_out, d_in = w.shape
        logical_dims.append((d_in, d_out))
        out_p = _round_up(d_out, LANE) if li == num - 1 else d_out
        w_t = _pad_to(w.T, (prev_p, out_p)).astype(matmul_dtype)   # (Din_p, Dout_p)
        b_p = _pad_to(b.reshape(1, -1), (1, out_p)).astype(jnp.float32)
        packed.append((w_t, b_p))
        prev_p = out_p
    return packed, logical_dims


# ----------------------------- Forward pass -------------------------------- #
def perceptron_forward(x, packed_params, logical_dims, output_dim,
                       matmul_dtype=jnp.bfloat16):
    """Single fused pallas_call over all layers with a batch-tiled grid."""
    batch, in_dim = x.shape
    in_p = packed_params[0][0].shape[0]
    out_p = packed_params[-1][0].shape[1]
    num_linear = len(packed_params)

    # ---- batch tiling: MXU-row-sized tile; tiny batches use one block ----
    sublane = 16 if matmul_dtype == jnp.bfloat16 else 8
    tile = _native_mxu_rows()
    b_p = _round_up(batch, sublane)
    if b_p <= tile:
        tb = b_p                      # single grid block for tiny batches
    else:
        b_p = _round_up(b_p, tile)
        tb = tile
    grid = (b_p // tb,)

    x_p = _pad_to(x, (b_p, in_p)).astype(matmul_dtype)

    flat = []
    for w_t, b in packed_params:
        flat.extend([w_t, b])

    # ---- advisory cost estimate from LOGICAL dims -------------------------
    flops = 0
    bytes_accessed = batch * in_dim * x.dtype.itemsize
    for d_in, d_out in logical_dims:
        flops += 2 * batch * d_in * d_out
        bytes_accessed += d_in * d_out * jnp.dtype(matmul_dtype).itemsize
        bytes_accessed += d_out * 4
    bytes_accessed += batch * output_dim * 4

    # ---- VMEM budget -------------------------------------------------------
    param_bytes = sum(a.size * a.dtype.itemsize for a in flat)
    max_feat = max([in_p] + [w.shape[1] for w, _ in packed_params])
    # One f32 activation slab per layer boundary (static unroll does not bound
    # live ranges), plus double-buffered x/out tiles, plus (possibly
    # double-buffered) resident params, plus headroom.
    act_bytes = (num_linear + 1) * tb * max_feat * 4
    io_bytes = 2 * (tb * in_p * jnp.dtype(matmul_dtype).itemsize + tb * out_p * 4)
    budget = 2 * param_bytes + io_bytes + act_bytes + (4 << 20)
    vmem_limit = int(min(_physical_vmem_bytes(), max(budget, 32 << 20)))

    kernel = functools.partial(_fused_mlp_kernel, num_linear=num_linear)

    def build_call(single_buffer_params):
        x_spec = pl.BlockSpec((tb, in_p), lambda i: (i, 0))
        out_spec = pl.BlockSpec((tb, out_p), lambda i: (i, 0))
        param_specs = []
        for arr in flat:
            kwargs = {}
            if single_buffer_params:
                # Block index never changes -> no need for double buffering.
                kwargs["pipeline_mode"] = pl.Buffered(1)
            param_specs.append(pl.BlockSpec(arr.shape, lambda i: (0, 0), **kwargs))
        return pl.pallas_call(
            kernel,
            out_shape=jax.ShapeDtypeStruct((b_p, out_p), jnp.float32),
            grid=grid,
            in_specs=[x_spec] + param_specs,
            out_specs=out_spec,
            compiler_params=pltpu.CompilerParams(
                dimension_semantics=("parallel",),
                vmem_limit_bytes=vmem_limit),
            cost_estimate=pl.CostEstimate(
                flops=flops, transcendentals=0, bytes_accessed=bytes_accessed),
        )

    try:
        out = build_call(single_buffer_params=True)(x_p, *flat)
    except Exception:
        # pipeline_mode not supported on a top-level pallas_call in this jax
        # version -> default (double) buffering; only costs extra VMEM.
        out = build_call(single_buffer_params=False)(x_p, *flat)

    return out[:batch, :output_dim]


# ---------------------------------- Main ----------------------------------- #
if __name__ == "__main__":
    # Small shapes consistent with the module's forward semantics.
    batch = 8
    input_dim = 64
    hidden_dim = 32
    output_dim = 10
    num_layers = 2  # two hidden Linear+ReLU layers, then classifier

    key = jax.random.PRNGKey(0)
    key, kx = jax.random.split(key)
    x = jax.random.normal(kx, (batch, input_dim), dtype=jnp.float32)

    params = init_perceptron_params(key, input_dim, num_layers, hidden_dim,
                                    output_dim)
    packed, logical_dims = pack_params(params, input_dim)  # one-time repack

    out = perceptron_forward(x, packed, logical_dims, output_dim)
    out = jax.block_until_ready(out)

    # Reference in plain f32 JAX (same math as the PyTorch module).  The
    # kernel uses bf16 matmul inputs with f32 accumulation, so tolerances are
    # bf16-appropriate.
    ref = x
    for i, (w, b) in enumerate(params):
        ref = ref @ w.T + b
        if i != len(params) - 1:
            ref = jnp.maximum(ref, 0.0)
    assert out.shape == (batch, output_dim)
    assert jnp.allclose(out, ref, atol=3e-2, rtol=3e-2), float(
        jnp.max(jnp.abs(out - ref)))

    print("KERNEL_OK")
</pallas_src>

<mosaic_0001>
module attributes {stable_mosaic.version = 11 : i64} {
  func.func @_fused_mlp_kernel(%arg0: i32, %arg1: memref<16x128xbf16, #tpu.memory_space<vmem>>, %arg2: memref<128x32xbf16, #tpu.memory_space<vmem>>, %arg3: memref<1x32xf32, #tpu.memory_space<vmem>>, %arg4: memref<32x32xbf16, #tpu.memory_space<vmem>>, %arg5: memref<1x32xf32, #tpu.memory_space<vmem>>, %arg6: memref<32x128xbf16, #tpu.memory_space<vmem>>, %arg7: memref<1x128xf32, #tpu.memory_space<vmem>>, %arg8: memref<16x128xf32, #tpu.memory_space<vmem>>) attributes {dimension_semantics = [#tpu.dimension_semantics<parallel>], iteration_bounds = array<i64: 1>, scalar_prefetch = 0 : i64, scratch_operands = 0 : i64, tpu.core_type = #tpu.core_type<tc>, window_params = [{transform_indices = @transform_0, window_bounds = array<i64: 16, 128>}, {pipeline_mode = #tpu.pipeline_mode<synchronous>, transform_indices = @transform_1, window_bounds = array<i64: 128, 32>}, {pipeline_mode = #tpu.pipeline_mode<synchronous>, transform_indices = @transform_2, window_bounds = array<i64: 1, 32>}, {pipeline_mode = #tpu.pipeline_mode<synchronous>, transform_indices = @transform_3, window_bounds = array<i64: 32, 32>}, {pipeline_mode = #tpu.pipeline_mode<synchronous>, transform_indices = @transform_4, window_bounds = array<i64: 1, 32>}, {pipeline_mode = #tpu.pipeline_mode<synchronous>, transform_indices = @transform_5, window_bounds = array<i64: 32, 128>}, {pipeline_mode = #tpu.pipeline_mode<synchronous>, transform_indices = @transform_6, window_bounds = array<i64: 1, 128>}, {transform_indices = @transform_7, window_bounds = array<i64: 16, 128>}]} {
    %c0 = arith.constant 0 : index
    %c0_0 = arith.constant 0 : index
    %0 = vector.load %arg1[%c0, %c0_0] : memref<16x128xbf16, #tpu.memory_space<vmem>>, vector<16x128xbf16>
    %c0_1 = arith.constant 0 : index
    %c0_2 = arith.constant 0 : index
    %1 = vector.load %arg2[%c0_1, %c0_2] : memref<128x32xbf16, #tpu.memory_space<vmem>>, vector<128x32xbf16>
    %c0_3 = arith.constant 0 : index
    %c0_4 = arith.constant 0 : index
    %2 = vector.load %arg3[%c0_3, %c0_4] : memref<1x32xf32, #tpu.memory_space<vmem>>, vector<1x32xf32>
    %cst = arith.constant dense<0.000000e+00> : vector<16x32xf32>
    %3 = tpu.matmul %0, %1, %cst {dimension_numbers = #tpu.dot_dimension_numbers<[1], [0], [0], [1], [0, 0, 1, 1], [], []>} : vector<16x128xbf16>, vector<128x32xbf16>, vector<16x32xf32> -> vector<16x32xf32>
    %4 = vector.broadcast %2 : vector<1x32xf32> to vector<16x32xf32>
    %5 = arith.addf %3, %4 : vector<16x32xf32>
    %cst_5 = arith.constant 0.000000e+00 : f32
    %6 = vector.broadcast %cst_5 : f32 to vector<16x32xf32>
    %7 = arith.maximumf %5, %6 : vector<16x32xf32>
    %c0_6 = arith.constant 0 : index
    %c0_7 = arith.constant 0 : index
    %8 = vector.load %arg4[%c0_6, %c0_7] : memref<32x32xbf16, #tpu.memory_space<vmem>>, vector<32x32xbf16>
    %c0_8 = arith.constant 0 : index
    %c0_9 = arith.constant 0 : index
    %9 = vector.load %arg5[%c0_8, %c0_9] : memref<1x32xf32, #tpu.memory_space<vmem>>, vector<1x32xf32>
    %10 = arith.truncf %7 : vector<16x32xf32> to vector<16x32xbf16>
    %cst_10 = arith.constant dense<0.000000e+00> : vector<16x32xf32>
    %11 = tpu.matmul %10, %8, %cst_10 {dimension_numbers = #tpu.dot_dimension_numbers<[1], [0], [0], [1], [0, 0, 1, 1], [], []>} : vector<16x32xbf16>, vector<32x32xbf16>, vector<16x32xf32> -> vector<16x32xf32>
    %12 = vector.broadcast %9 : vector<1x32xf32> to vector<16x32xf32>
    %13 = arith.addf %11, %12 : vector<16x32xf32>
    %cst_11 = arith.constant 0.000000e+00 : f32
    %14 = vector.broadcast %cst_11 : f32 to vector<16x32xf32>
    %15 = arith.maximumf %13, %14 : vector<16x32xf32>
    %c0_12 = arith.constant 0 : index
    %c0_13 = arith.constant 0 : index
    %16 = vector.load %arg6[%c0_12, %c0_13] : memref<32x128xbf16, #tpu.memory_space<vmem>>, vector<32x128xbf16>
    %c0_14 = arith.constant 0 : index
    %c0_15 = arith.constant 0 : index
    %17 = vector.load %arg7[%c0_14, %c0_15] : memref<1x128xf32, #tpu.memory_space<vmem>>, vector<1x128xf32>
    %18 = arith.truncf %15 : vector<16x32xf32> to vector<16x32xbf16>
    %cst_16 = arith.constant dense<0.000000e+00> : vector<16x128xf32>
    %19 = tpu.matmul %18, %16, %cst_16 {dimension_numbers = #tpu.dot_dimension_numbers<[1], [0], [0], [1], [0, 0, 1, 1], [], []>} : vector<16x32xbf16>, vector<32x128xbf16>, vector<16x128xf32> -> vector<16x128xf32>
    %20 = vector.broadcast %17 : vector<1x128xf32> to vector<16x128xf32>
    %21 = arith.addf %19, %20 : vector<16x128xf32>
    %c0_17 = arith.constant 0 : index
    %c0_18 = arith.constant 0 : index
    %22 = vector.load %arg8[%c0_17, %c0_18] : memref<16x128xf32, #tpu.memory_space<vmem>>, vector<16x128xf32>
    tpu.vector_store %arg8[%c0_17, %c0_18], %21 {strides = array<i32>} : memref<16x128xf32, #tpu.memory_space<vmem>>, vector<16x128xf32>,
    return
  }
  func.func @transform_0(%arg0: i32) -> (i32, i32) {
    %c0_i32 = arith.constant 0 : i32
    %c0_i32_0 = arith.constant 0 : i32
    return %arg0, %c0_i32 : i32, i32
  }
  func.func @transform_1(%arg0: i32) -> (i32, i32) {
    %c0_i32 = arith.constant 0 : i32
    %c0_i32_0 = arith.constant 0 : i32
    %c0_i32_1 = arith.constant 0 : i32
    return %c0_i32, %c0_i32_0 : i32, i32
  }
  func.func @transform_2(%arg0: i32) -> (i32, i32) {
    %c0_i32 = arith.constant 0 : i32
    %c0_i32_0 = arith.constant 0 : i32
    %c0_i32_1 = arith.constant 0 : i32
    return %c0_i32, %c0_i32_0 : i32, i32
  }
  func.func @transform_3(%arg0: i32) -> (i32, i32) {
    %c0_i32 = arith.constant 0 : i32
    %c0_i32_0 = arith.constant 0 : i32
    %c0_i32_1 = arith.constant 0 : i32
    return %c0_i32, %c0_i32_0 : i32, i32
  }
  func.func @transform_4(%arg0: i32) -> (i32, i32) {
    %c0_i32 = arith.constant 0 : i32
    %c0_i32_0 = arith.constant 0 : i32
    %c0_i32_1 = arith.constant 0 : i32
    return %c0_i32, %c0_i32_0 : i32, i32
  }
  func.func @transform_5(%arg0: i32) -> (i32, i32) {
    %c0_i32 = arith.constant 0 : i32
    %c0_i32_0 = arith.constant 0 : i32
    %c0_i32_1 = arith.constant 0 : i32
    return %c0_i32, %c0_i32_0 : i32, i32
  }
  func.func @transform_6(%arg0: i32) -> (i32, i32) {
    %c0_i32 = arith.constant 0 : i32
    %c0_i32_0 = arith.constant 0 : i32
    %c0_i32_1 = arith.constant 0 : i32
    return %c0_i32, %c0_i32_0 : i32, i32
  }
  func.func @transform_7(%arg0: i32) -> (i32, i32) {
    %c0_i32 = arith.constant 0 : i32
    %c0_i32_0 = arith.constant 0 : i32
    return %arg0, %c0_i32 : i32, i32
  }
}

module attributes {stable_mosaic.version = 11 : i64} {
  func.func @_fused_mlp_kernel(%arg0: i32, %arg1: memref<16x128xbf16, #tpu.memory_space<vmem>>, %arg2: memref<128x32xbf16, #tpu.memory_space<vmem>>, %arg3: memref<1x32xf32, #tpu.memory_space<vmem>>, %arg4: memref<32x32xbf16, #tpu.memory_space<vmem>>, %arg5: memref<1x32xf32, #tpu.memory_space<vmem>>, %arg6: memref<32x128xbf16, #tpu.memory_space<vmem>>, %arg7: memref<1x128xf32, #tpu.memory_space<vmem>>, %arg8: memref<16x128xf32, #tpu.memory_space<vmem>>) attributes {dimension_semantics = [#tpu.dimension_semantics<parallel>], iteration_bounds = array<i64: 1>, scalar_prefetch = 0 : i64, scratch_operands = 0 : i64, tpu.core_type = #tpu.core_type<tc>, window_params = [{transform_indices = @transform_0, window_bounds = array<i64: 16, 128>}, {pipeline_mode = #tpu.pipeline_mode<synchronous>, transform_indices = @transform_1, window_bounds = array<i64: 128, 32>}, {pipeline_mode = #tpu.pipeline_mode<synchronous>, transform_indices = @transform_2, window_bounds = array<i64: 1, 32>}, {pipeline_mode = #tpu.pipeline_mode<synchronous>, transform_indices = @transform_3, window_bounds = array<i64: 32, 32>}, {pipeline_mode = #tpu.pipeline_mode<synchronous>, transform_indices = @transform_4, window_bounds = array<i64: 1, 32>}, {pipeline_mode = #tpu.pipeline_mode<synchronous>, transform_indices = @transform_5, window_bounds = array<i64: 32, 128>}, {pipeline_mode = #tpu.pipeline_mode<synchronous>, transform_indices = @transform_6, window_bounds = array<i64: 1, 128>}, {transform_indices = @transform_7, window_bounds = array<i64: 16, 128>}]} {
    %c0 = arith.constant 0 : index
    %c0_0 = arith.constant 0 : index
    %0 = vector.load %arg1[%c0, %c0_0] : memref<16x128xbf16, #tpu.memory_space<vmem>>, vector<16x128xbf16>
    %c0_1 = arith.constant 0 : index
    %c0_2 = arith.constant 0 : index
    %1 = vector.load %arg2[%c0_1, %c0_2] : memref<128x32xbf16, #tpu.memory_space<vmem>>, vector<128x32xbf16>
    %c0_3 = arith.constant 0 : index
    %c0_4 = arith.constant 0 : index
    %2 = vector.load %arg3[%c0_3, %c0_4] : memref<1x32xf32, #tpu.memory_space<vmem>>, vector<1x32xf32>
    %cst = arith.constant dense<0.000000e+00> : vector<16x32xf32>
    %3 = tpu.matmul %0, %1, %cst {dimension_numbers = #tpu.dot_dimension_numbers<[1], [0], [0], [1], [0, 0, 1, 1], [], []>} : vector<16x128xbf16>, vector<128x32xbf16>, vector<16x32xf32> -> vector<16x32xf32>
    %4 = vector.broadcast %2 : vector<1x32xf32> to vector<16x32xf32>
    %5 = arith.addf %3, %4 : vector<16x32xf32>
    %cst_5 = arith.constant 0.000000e+00 : f32
    %6 = vector.broadcast %cst_5 : f32 to vector<16x32xf32>
    %7 = arith.maximumf %5, %6 : vector<16x32xf32>
    %c0_6 = arith.constant 0 : index
    %c0_7 = arith.constant 0 : index
    %8 = vector.load %arg4[%c0_6, %c0_7] : memref<32x32xbf16, #tpu.memory_space<vmem>>, vector<32x32xbf16>
    %c0_8 = arith.constant 0 : index
    %c0_9 = arith.constant 0 : index
    %9 = vector.load %arg5[%c0_8, %c0_9] : memref<1x32xf32, #tpu.memory_space<vmem>>, vector<1x32xf32>
    %10 = arith.truncf %7 : vector<16x32xf32> to vector<16x32xbf16>
    %cst_10 = arith.constant dense<0.000000e+00> : vector<16x32xf32>
    %11 = tpu.matmul %10, %8, %cst_10 {dimension_numbers = #tpu.dot_dimension_numbers<[1], [0], [0], [1], [0, 0, 1, 1], [], []>} : vector<16x32xbf16>, vector<32x32xbf16>, vector<16x32xf32> -> vector<16x32xf32>
    %12 = vector.broadcast %9 : vector<1x32xf32> to vector<16x32xf32>
    %13 = arith.addf %11, %12 : vector<16x32xf32>
    %cst_11 = arith.constant 0.000000e+00 : f32
    %14 = vector.broadcast %cst_11 : f32 to vector<16x32xf32>
    %15 = arith.maximumf %13, %14 : vector<16x32xf32>
    %c0_12 = arith.constant 0 : index
    %c0_13 = arith.constant 0 : index
    %16 = vector.load %arg6[%c0_12, %c0_13] : memref<32x128xbf16, #tpu.memory_space<vmem>>, vector<32x128xbf16>
    %c0_14 = arith.constant 0 : index
    %c0_15 = arith.constant 0 : index
    %17 = vector.load %arg7[%c0_14, %c0_15] : memref<1x128xf32, #tpu.memory_space<vmem>>, vector<1x128xf32>
    %18 = arith.truncf %15 : vector<16x32xf32> to vector<16x32xbf16>
    %cst_16 = arith.constant dense<0.000000e+00> : vector<16x128xf32>
    %19 = tpu.matmul %18, %16, %cst_16 {dimension_numbers = #tpu.dot_dimension_numbers<[1], [0], [0], [1], [0, 0, 1, 1], [], []>} : vector<16x32xbf16>, vector<32x128xbf16>, vector<16x128xf32> -> vector<16x128xf32>
    %20 = vector.broadcast %17 : vector<1x128xf32> to vector<16x128xf32>
    %21 = arith.addf %19, %20 : vector<16x128xf32>
    %c0_17 = arith.constant 0 : index
    %c0_18 = arith.constant 0 : index
    %22 = vector.load %arg8[%c0_17, %c0_18] : memref<16x128xf32, #tpu.memory_space<vmem>>, vector<16x128xf32>
    tpu.vector_store %arg8[%c0_17, %c0_18], %21 {strides = array<i32>} : memref<16x128xf32, #tpu.memory_space<vmem>>, vector<16x128xf32>,
    return
  }
  func.func @transform_0(%arg0: i32) -> (i32, i32) {
    %c0_i32 = arith.constant 0 : i32
    %c0_i32_0 = arith.constant 0 : i32
    return %arg0, %c0_i32 : i32, i32
  }
  func.func @transform_1(%arg0: i32) -> (i32, i32) {
    %c0_i32 = arith.constant 0 : i32
    %c0_i32_0 = arith.constant 0 : i32
    %c0_i32_1 = arith.constant 0 : i32
    return %c0_i32, %c0_i32_0 : i32, i32
  }
  func.func @transform_2(%arg0: i32) -> (i32, i32) {
    %c0_i32 = arith.constant 0 : i32
    %c0_i32_0 = arith.constant 0 : i32
    %c0_i32_1 = arith.constant 0 : i32
    return %c0_i32, %c0_i32_0 : i32, i32
  }
  func.func @transform_3(%arg0: i32) -> (i32, i32) {
    %c0_i32 = arith.constant 0 : i32
    %c0_i32_0 = arith.constant 0 : i32
    %c0_i32_1 = arith.constant 0 : i32
    return %c0_i32, %c0_i32_0 : i32, i32
  }
  func.func @transform_4(%arg0: i32) -> (i32, i32) {
    %c0_i32 = arith.constant 0 : i32
    %c0_i32_0 = arith.constant 0 : i32
    %c0_i32_1 = arith.constant 0 : i32
    return %c0_i32, %c0_i32_0 : i32, i32
  }
  func.func @transform_5(%arg0: i32) -> (i32, i32) {
    %c0_i32 = arith.constant 0 : i32
    %c0_i32_0 = arith.constant 0 : i32
    %c0_i32_1 = arith.constant 0 : i32
    return %c0_i32, %c0_i32_0 : i32, i32
  }
  func.func @transform_6(%arg0: i32) -> (i32, i32) {
    %c0_i32 = arith.constant 0 : i32
    %c0_i32_0 = arith.constant 0 : i32
    %c0_i32_1 = arith.constant 0 : i32
    return %c0_i32, %c0_i32_0 : i32, i32
  }
  func.func @transform_7(%arg0: i32) -> (i32, i32) {
    %c0_i32 = arith.constant 0 : i32
    %c0_i32_0 = arith.constant 0 : i32
    return %arg0, %c0_i32 : i32, i32
  }
}

</mosaic_0001>

<llo_original>
// kernel: tpu_custom_call.1
$region0: #{tpu_custom_call.1}
  #allocation0 [shape = 'u32[]', space=smem, size = 0x4, offset = 0x4, fixed_abs, tag = 'smem constant byte address 0x4 - core index']
  #allocation1 [shape = 'u32[144,128]{1,0:T(1,128)}', space=vmem, size = 0x12000, scoped, tag = 'internal scratch']
  %s0 = inlined_call_operand.vmem [shape: bf16[16,128], index: 0, kind: input, shape index: {}]
  %s1 = inlined_call_operand.vmem [shape: bf16[128,32], index: 1, kind: input, shape index: {}]
  %s2 = inlined_call_operand.vmem [shape: f32[1,32], index: 2, kind: input, shape index: {}]
  %s3 = inlined_call_operand.vmem [shape: bf16[32,32], index: 3, kind: input, shape index: {}]
  %s4 = inlined_call_operand.vmem [shape: f32[1,32], index: 4, kind: input, shape index: {}]
  %s5 = inlined_call_operand.vmem [shape: bf16[32,128], index: 5, kind: input, shape index: {}]
  %s6 = inlined_call_operand.vmem [shape: f32[1,128], index: 6, kind: input, shape index: {}]
  %s7 = inlined_call_operand.hbm [shape: f32[16,128], index: 7, kind: output, shape index: {}]
  %s8 = sld [smem:[#allocation0]]
  $region38: #{tpu_custom_call.1} parent=0
    _
  %s10 = ssub.s32 1, %s8
  %s11 = scalar_select 0, %s10, %s8
  $region1: #{tpu_custom_call.1} parent=0
    #allocation2 [shape = 'u8[8192]{0}', space=vmem, size = 0x2000, scoped, tag = 'output window, operand 0, single buffered']
    #allocation3 [shape = 's32[1]{0}', space=sflag, size = 0x4, scoped, tag = 'scoped memory for tpu_custom_call.1']
    %12 = vsyncpa [#allocation3], 0
    // Predicated region
    $region2: #{tpu_custom_call.1} parent=1 // pred_check
      _
    $region3: #{tpu_custom_call.1} parent=1 // pred_check_branch
      %14 = sbr.rel (0) target = $region5
    $region4: #{tpu_custom_call.1} parent=1 // pred_region
      _
    $region5: #{tpu_custom_call.1} parent=1 // pred_fallthru
      _
    // Predicated region
    $region6: #{tpu_custom_call.1} parent=1 // pred_check
      _
    $region7: #{tpu_custom_call.1} parent=1 // pred_check_branch
      %16 = sbr.rel (0) target = $region9
    $region8: #{tpu_custom_call.1} parent=1 // pred_region
      _
    $region9: #{tpu_custom_call.1} parent=1 // pred_fallthru
      _
    // Predicated region
    $region10: #{tpu_custom_call.1} parent=1 // pred_check
      _
    $region11: #{tpu_custom_call.1} parent=1 // pred_check_branch
      %18 = sbr.rel (0) target = $region13
    $region12: #{tpu_custom_call.1} parent=1 // pred_region
      _
    $region13: #{tpu_custom_call.1} parent=1 // pred_fallthru
      _
    // Predicated region
    $region14: #{tpu_custom_call.1} parent=1 // pred_check
      _
    $region15: #{tpu_custom_call.1} parent=1 // pred_check_branch
      %20 = sbr.rel (0) target = $region17
    $region16: #{tpu_custom_call.1} parent=1 // pred_region
      _
    $region17: #{tpu_custom_call.1} parent=1 // pred_fallthru
      _
    // Predicated region
    $region18: #{tpu_custom_call.1} parent=1 // pred_check
      _
    $region19: #{tpu_custom_call.1} parent=1 // pred_check_branch
      %22 = sbr.rel (0) target = $region21
    $region20: #{tpu_custom_call.1} parent=1 // pred_region
      _
    $region21: #{tpu_custom_call.1} parent=1 // pred_fallthru
      _
    // Predicated region
    $region22: #{tpu_custom_call.1} parent=1 // pred_check
      _
    $region23: #{tpu_custom_call.1} parent=1 // pred_check_branch
      %24 = sbr.rel (0) target = $region25
    $region24: #{tpu_custom_call.1} parent=1 // pred_region
      _
    $region25: #{tpu_custom_call.1} parent=1 // pred_fallthru
      _
    // Predicated region
    $region26: #{tpu_custom_call.1} parent=1 // pred_check
      _
    $region27: #{tpu_custom_call.1} parent=1 // pred_check_branch
      %26 = sbr.rel (0) target = $region29
    $region28: #{tpu_custom_call.1} parent=1 // pred_region
      _
    $region29: #{tpu_custom_call.1} parent=1 // pred_fallthru
      _
    %v28 = vld [vmem:[%s0] sm:$0xf]
    %v29 = vld [vmem:[%s0 + $0x4] sm:$0xf]
    %v30 = vld [vmem:[%s1] sm:$0xf]
    %v31 = vld [vmem:[%s1 + $0x4] sm:$0xf]
    %v32 = vld [vmem:[%s1 + $0x8] sm:$0xf]
    %v33 = vld [vmem:[%s1 + $0xc] sm:$0xf]
    %v34 = vld [vmem:[%s1 + $0x10] sm:$0xf]
    %v35 = vld [vmem:[%s1 + $0x14] sm:$0xf]
    %v36 = vld [vmem:[%s1 + $0x18] sm:$0xf]
    %v37 = vld [vmem:[%s1 + $0x1c] sm:$0xf]
    %v38 = vld [vmem:[%s1 + $0x20] sm:$0xf]
    %v39 = vld [vmem:[%s1 + $0x24] sm:$0xf]
    %v40 = vld [vmem:[%s1 + $0x28] sm:$0xf]
    %v41 = vld [vmem:[%s1 + $0x2c] sm:$0xf]
    %v42 = vld [vmem:[%s1 + $0x30] sm:$0xf]
    %v43 = vld [vmem:[%s1 + $0x34] sm:$0xf]
    %v44 = vld [vmem:[%s1 + $0x38] sm:$0xf]
    %v45 = vld [vmem:[%s1 + $0x3c] sm:$0xf]
    %v46 = vld [vmem:[%s2] sm:$0x1]
    %v48 = vlaneseq
    %v49 = vshrl.u32 %v48, 7
    %v50 = vsub.s32 0, %v49
    %v51 = vrot.slane %v46, %v50
    %v55 = vunpack.c.l.b16 %v28
    %v56 = vunpack.c.l.b16 %v29
    %v57 = vpack.c.b16 %v56, %v55
    %v75 = vunpack.c.l.b16 %v30
    %v76 = vunpack.c.l.b16 %v31
    %v77 = vunpack.c.l.b16 %v32
    %v78 = vunpack.c.l.b16 %v33
    %v79 = vunpack.c.l.b16 %v34
    %v80 = vunpack.c.l.b16 %v35
    %v81 = vunpack.c.l.b16 %v36
    %v82 = vunpack.c.l.b16 %v37
    %v83 = vunpack.c.l.b16 %v38
    %v84 = vunpack.c.l.b16 %v39
    %v85 = vunpack.c.l.b16 %v40
    %v86 = vunpack.c.l.b16 %v41
    %v87 = vunpack.c.l.b16 %v42
    %v88 = vunpack.c.l.b16 %v43
    %v89 = vunpack.c.l.b16 %v44
    %v90 = vunpack.c.l.b16 %v45
    %v91 = vpack.c.b16 %v76, %v75
    %v92 = vpack.c.b16 %v78, %v77
    %v93 = vpack.c.b16 %v80, %v79
    %v94 = vpack.c.b16 %v82, %v81
    %v95 = vpack.c.b16 %v84, %v83
    %v96 = vpack.c.b16 %v86, %v85
    %v97 = vpack.c.b16 %v88, %v87
    %v98 = vpack.c.b16 %v90, %v89
    %107 = vmatprep.subr.bf16.mxu0 0
    %108 = vmatpush1.bf16.msra.mxu0 %v98
    %109 = vmatprep.subr.bf16.mxu0 0
    %110 = vmatpush1.bf16.msra.mxu0 %v97
    %111 = vmatprep.subr.bf16.mxu0 0
    %112 = vmatpush1.bf16.msra.mxu0 %v96
    %113 = vmatprep.subr.bf16.mxu0 0
    %114 = vmatpush1.bf16.msra.mxu0 %v95
    %115 = vmatprep.subr.bf16.mxu0 0
    %116 = vmatpush1.bf16.msra.mxu0 %v94
    %117 = vmatprep.subr.bf16.mxu0 0
    %118 = vmatpush1.bf16.msra.mxu0 %v93
    %119 = vmatprep.subr.bf16.mxu0 0
    %120 = vmatpush1.bf16.msra.mxu0 %v92
    %121 = vmatprep.subr.bf16.mxu0 0
    %122 = vmatpush1.bf16.msra.mxu0 %v91
    %123 = vmatprep.subr.bf16.mxu0 0
    %124 = vmatpush2.bf16.msra.mxu0 0
    %125 = vmatprep.subr.bf16.mxu0 0
    %126 = vmatpush2.bf16.msra.mxu0 0
    %127 = vmatprep.subr.bf16.mxu0 0
    %128 = vmatpush2.bf16.msra.mxu0 0
    %129 = vmatprep.subr.bf16.mxu0 0
    %130 = vmatpush2.bf16.msra.mxu0 0
    %131 = vmatprep.subr.bf16.mxu0 0
    %132 = vmatpush2.bf16.msra.mxu0 0
    %133 = vmatprep.subr.bf16.mxu0 0
    %134 = vmatpush2.bf16.msra.mxu0 0
    %135 = vmatprep.subr.bf16.mxu0 0
    %136 = vmatpush2.bf16.msra.mxu0 0
    %137 = vmatprep.subr.bf16.mxu0 0
    %138 = vmatpush2.bf16.msra.mxu0 0
    %139 = vmatprep.mubr.bf16.mxu0 0
    %140 = vmatmul.mubr.bf16.gmra.mxu0 %v57
    %v141 = vpop.f32.mrf.mxu0
    %v142 = vadd.f32 %v51, %v141
    %v143 = vpop.f32.mrf.mxu0
    %v144 = vpop.f32.mrf.mxu0
    %v145 = vadd.f32 %v51, %v144
    %v146 = vpop.f32.mrf.mxu0
    %147 = vdwg.mxu0
    %v148 = vmax.f32 %v142, 0.0
    %v149 = vmax.f32 %v145, 0.0
    %v150 = vld [vmem:[%s3] sm:$0xf]
    %v151 = vld [vmem:[%s3 + $0x4] sm:$0xf]
    %v152 = vld [vmem:[%s3 + $0x8] sm:$0xf]
    %v153 = vld [vmem:[%s3 + $0xc] sm:$0xf]
    %v154 = vld [vmem:[%s4] sm:$0x1]
    %v155 = vpack.c.bf16 %v149, %v148
    %v157 = vlaneseq
    %v158 = vshrl.u32 %v157, 7
    %v159 = vsub.s32 0, %v158
    %v160 = vrot.slane %v154, %v159
    %v166 = vunpack.c.l.b16 %v150
    %v167 = vunpack.c.l.b16 %v151
    %v168 = vunpack.c.l.b16 %v152
    %v169 = vunpack.c.l.b16 %v153
    %v170 = vpack.c.b16 %v167, %v166
    %v171 = vpack.c.b16 %v169, %v168
    %vm174 = vcmask 261120
    %v176 = vsel %vm174, %v155, 0
    %178 = vmatprep.subr.bf16.mxu0 0
    %179 = vmatpush1.bf16.msra.mxu0 0
    %180 = vmatprep.subr.bf16.mxu0 0
    %181 = vmatpush1.bf16.msra.mxu0 0
    %182 = vmatprep.subr.bf16.mxu0 0
    %183 = vmatpush1.bf16.msra.mxu0 0
    %184 = vmatprep.subr.bf16.mxu0 0
    %185 = vmatpush1.bf16.msra.mxu0 0
    %186 = vmatprep.subr.bf16.mxu0 0
    %187 = vmatpush1.bf16.msra.mxu0 0
    %188 = vmatprep.subr.bf16.mxu0 0
    %189 = vmatpush1.bf16.msra.mxu0 0
    %190 = vmatprep.subr.bf16.mxu0 0
    %191 = vmatpush1.bf16.msra.mxu0 %v171
    %192 = vmatprep.subr.bf16.mxu0 0
    %193 = vmatpush1.bf16.msra.mxu0 %v170
    %194 = vmatprep.subr.bf16.mxu0 0
    %195 = vmatpush2.bf16.msra.mxu0 0
    %196 = vmatprep.subr.bf16.mxu0 0
    %197 = vmatpush2.bf16.msra.mxu0 0
    %198 = vmatprep.subr.bf16.mxu0 0
    %199 = vmatpush2.bf16.msra.mxu0 0
    %200 = vmatprep.subr.bf16.mxu0 0
    %201 = vmatpush2.bf16.msra.mxu0 0
    %202 = vmatprep.subr.bf16.mxu0 0
    %203 = vmatpush2.bf16.msra.mxu0 0
    %204 = vmatprep.subr.bf16.mxu0 0
    %205 = vmatpush2.bf16.msra.mxu0 0
    %206 = vmatprep.subr.bf16.mxu0 0
    %207 = vmatpush2.bf16.msra.mxu0 0
    %208 = vmatprep.subr.bf16.mxu0 0
    %209 = vmatpush2.bf16.msra.mxu0 0
    %210 = vmatprep.mubr.bf16.mxu0 0
    %211 = vmatmul.mubr.bf16.gmra.mxu0 %v176
    %v212 = vpop.f32.mrf.mxu0
    %v213 = vadd.f32 %v160, %v212
    %v214 = vpop.f32.mrf.mxu0
    %v215 = vpop.f32.mrf.mxu0
    %v216 = vadd.f32 %v160, %v215
    %v217 = vpop.f32.mrf.mxu0
    %218 = vdwg.mxu0
    %v219 = vmax.f32 %v213, 0.0
    %v220 = vmax.f32 %v216, 0.0
    %v221 = vld [vmem:[%s5] sm:$0xf]
    %v222 = vld [vmem:[%s5 + $0x4] sm:$0xf]
    %v223 = vld [vmem:[%s5 + $0x8] sm:$0xf]
    %v224 = vld [vmem:[%s5 + $0xc] sm:$0xf]
    %v225 = vld [vmem:[%s6] sm:$0x1]
    %v226 = vpack.c.bf16 %v220, %v219
    %v228 = vlaneseq
    %v229 = vshrl.u32 %v228, 7
    %v230 = vsub.s32 0, %v229
    %v231 = vrot.slane %v225, %v230
    %v237 = vunpack.c.l.b16 %v221
    %v238 = vunpack.c.l.b16 %v222
    %v239 = vunpack.c.l.b16 %v223
    %v240 = vunpack.c.l.b16 %v224
    %v241 = vpack.c.b16 %v238, %v237
    %v242 = vpack.c.b16 %v240, %v239
    %v246 = vsel %vm174, %v226, 0
    %248 = vmatprep.subr.bf16.mxu0 0
    %249 = vmatpush1.bf16.msra.mxu0 0
    %250 = vmatprep.subr.bf16.mxu0 0
    %251 = vmatpush1.bf16.msra.mxu0 0
    %252 = vmatprep.subr.bf16.mxu0 0
    %253 = vmatpush1.bf16.msra.mxu0 0
    %254 = vmatprep.subr.bf16.mxu0 0
    %255 = vmatpush1.bf16.msra.mxu0 0
    %256 = vmatprep.subr.bf16.mxu0 0
    %257 = vmatpush1.bf16.msra.mxu0 0
    %258 = vmatprep.subr.bf16.mxu0 0
    %259 = vmatpush1.bf16.msra.mxu0 0
    %260 = vmatprep.subr.bf16.mxu0 0
    %261 = vmatpush1.bf16.msra.mxu0 %v242
    %262 = vmatprep.subr.bf16.mxu0 0
    %263 = vmatpush1.bf16.msra.mxu0 %v241
    %264 = vmatprep.subr.bf16.mxu0 0
    %265 = vmatpush2.bf16.msra.mxu0 0
    %266 = vmatprep.subr.bf16.mxu0 0
    %267 = vmatpush2.bf16.msra.mxu0 0
    %268 = vmatprep.subr.bf16.mxu0 0
    %269 = vmatpush2.bf16.msra.mxu0 0
    %270 = vmatprep.subr.bf16.mxu0 0
    %271 = vmatpush2.bf16.msra.mxu0 0
    %272 = vmatprep.subr.bf16.mxu0 0
    %273 = vmatpush2.bf16.msra.mxu0 0
    %274 = vmatprep.subr.bf16.mxu0 0
    %275 = vmatpush2.bf16.msra.mxu0 0
    %276 = vmatprep.subr.bf16.mxu0 0
    %277 = vmatpush2.bf16.msra.mxu0 0
    %278 = vmatprep.subr.bf16.mxu0 0
    %279 = vmatpush2.bf16.msra.mxu0 0
    %280 = vmatprep.mubr.bf16.mxu0 0
    %281 = vmatmul.mubr.bf16.gmra.mxu0 %v246
    %v282 = vpop.f32.mrf.mxu0
    %v283 = vadd.f32 %v231, %v282
    %v284 = vpop.f32.mrf.mxu0
    %v285 = vpop.f32.mrf.mxu0
    %v286 = vadd.f32 %v231, %v285
    %v287 = vpop.f32.mrf.mxu0
    %288 = vdwg.mxu0
    %289 = vst [vmem:[#allocation2] sm:$0xff] %v283
    %290 = vst [vmem:[#allocation2 + $0x8] sm:$0xff] %v286
    // Predicated region
    $region30: #{tpu_custom_call.1} parent=1 // pred_check
      _
    $region31: #{tpu_custom_call.1} parent=1 // pred_check_branch
      %292 = sbr.rel (0) target = $region33
    $region32: #{tpu_custom_call.1} parent=1 // pred_region
      %s294 = ssub.s32 256, 256
      %295 = vsyncadd [#allocation3], %s294
      %s296 = sshll.u32 [#allocation2], 4
      %s297 = int_to_ptr.vmem [resolvable:$true] %s296
      %302 = dma.vmem_to_hbm [thread:$0]  %s297, 256, %s7, [#allocation3], 128, 128, 8
    $region33: #{tpu_custom_call.1} parent=1 // pred_fallthru
      _
    // Predicated region
    $region34: #{tpu_custom_call.1} parent=1 // pred_check
      _
    $region35: #{tpu_custom_call.1} parent=1 // pred_check_branch
      %304 = sbr.rel (0) target = $region37
    $region36: #{tpu_custom_call.1} parent=1 // pred_region
      %305 = dma.done [#allocation3], 256
    $region37: #{tpu_custom_call.1} parent=1 // pred_fallthru
      _
    %306 = vsyncpa [#allocation3], 1

// kernel: tpu_custom_call.1
$region0: #{tpu_custom_call.1}
  #allocation0 [shape = 'u32[]', space=smem, size = 0x4, offset = 0x4, fixed_abs, tag = 'smem constant byte address 0x4 - core index']
  #allocation1 [shape = 'u32[144,128]{1,0:T(1,128)}', space=vmem, size = 0x12000, scoped, tag = 'internal scratch']
  %s0 = inlined_call_operand.vmem [shape: bf16[16,128], index: 0, kind: input, shape index: {}]
  %s1 = inlined_call_operand.vmem [shape: bf16[128,32], index: 1, kind: input, shape index: {}]
  %s2 = inlined_call_operand.vmem [shape: f32[1,32], index: 2, kind: input, shape index: {}]
  %s3 = inlined_call_operand.vmem [shape: bf16[32,32], index: 3, kind: input, shape index: {}]
  %s4 = inlined_call_operand.vmem [shape: f32[1,32], index: 4, kind: input, shape index: {}]
  %s5 = inlined_call_operand.vmem [shape: bf16[32,128], index: 5, kind: input, shape index: {}]
  %s6 = inlined_call_operand.vmem [shape: f32[1,128], index: 6, kind: input, shape index: {}]
  %s7 = inlined_call_operand.hbm [shape: f32[16,128], index: 7, kind: output, shape index: {}]
  %s8 = sld [smem:[#allocation0]]
  $region38: #{tpu_custom_call.1} parent=0
    _
  %s10 = ssub.s32 1, %s8
  %s11 = scalar_select 0, %s10, %s8
  $region1: #{tpu_custom_call.1} parent=0
    #allocation2 [shape = 'u8[8192]{0}', space=vmem, size = 0x2000, scoped, tag = 'output window, operand 0, single buffered']
    #allocation3 [shape = 's32[1]{0}', space=sflag, size = 0x4, scoped, tag = 'scoped memory for tpu_custom_call.1']
    %12 = vsyncpa [#allocation3], 0
    // Predicated region
    $region2: #{tpu_custom_call.1} parent=1 // pred_check
      _
    $region3: #{tpu_custom_call.1} parent=1 // pred_check_branch
      %14 = sbr.rel (0) target = $region5
    $region4: #{tpu_custom_call.1} parent=1 // pred_region
      _
    $region5: #{tpu_custom_call.1} parent=1 // pred_fallthru
      _
    // Predicated region
    $region6: #{tpu_custom_call.1} parent=1 // pred_check
      _
    $region7: #{tpu_custom_call.1} parent=1 // pred_check_branch
      %16 = sbr.rel (0) target = $region9
    $region8: #{tpu_custom_call.1} parent=1 // pred_region
      _
    $region9: #{tpu_custom_call.1} parent=1 // pred_fallthru
      _
    // Predicated region
    $region10: #{tpu_custom_call.1} parent=1 // pred_check
      _
    $region11: #{tpu_custom_call.1} parent=1 // pred_check_branch
      %18 = sbr.rel (0) target = $region13
    $region12: #{tpu_custom_call.1} parent=1 // pred_region
      _
    $region13: #{tpu_custom_call.1} parent=1 // pred_fallthru
      _
    // Predicated region
    $region14: #{tpu_custom_call.1} parent=1 // pred_check
      _
    $region15: #{tpu_custom_call.1} parent=1 // pred_check_branch
      %20 = sbr.rel (0) target = $region17
    $region16: #{tpu_custom_call.1} parent=1 // pred_region
      _
    $region17: #{tpu_custom_call.1} parent=1 // pred_fallthru
      _
    // Predicated region
    $region18: #{tpu_custom_call.1} parent=1 // pred_check
      _
    $region19: #{tpu_custom_call.1} parent=1 // pred_check_branch
      %22 = sbr.rel (0) target = $region21
    $region20: #{tpu_custom_call.1} parent=1 // pred_region
      _
    $region21: #{tpu_custom_call.1} parent=1 // pred_fallthru
      _
    // Predicated region
    $region22: #{tpu_custom_call.1} parent=1 // pred_check
      _
    $region23: #{tpu_custom_call.1} parent=1 // pred_check_branch
      %24 = sbr.rel (0) target = $region25
    $region24: #{tpu_custom_call.1} parent=1 // pred_region
      _
    $region25: #{tpu_custom_call.1} parent=1 // pred_fallthru
      _
    // Predicated region
    $region26: #{tpu_custom_call.1} parent=1 // pred_check
      _
    $region27: #{tpu_custom_call.1} parent=1 // pred_check_branch
      %26 = sbr.rel (0) target = $region29
    $region28: #{tpu_custom_call.1} parent=1 // pred_region
      _
    $region29: #{tpu_custom_call.1} parent=1 // pred_fallthru
      _
    %v28 = vld [vmem:[%s0] sm:$0xf]
    %v29 = vld [vmem:[%s0 + $0x4] sm:$0xf]
    %v30 = vld [vmem:[%s1] sm:$0xf]
    %v31 = vld [vmem:[%s1 + $0x4] sm:$0xf]
    %v32 = vld [vmem:[%s1 + $0x8] sm:$0xf]
    %v33 = vld [vmem:[%s1 + $0xc] sm:$0xf]
    %v34 = vld [vmem:[%s1 + $0x10] sm:$0xf]
    %v35 = vld [vmem:[%s1 + $0x14] sm:$0xf]
    %v36 = vld [vmem:[%s1 + $0x18] sm:$0xf]
    %v37 = vld [vmem:[%s1 + $0x1c] sm:$0xf]
    %v38 = vld [vmem:[%s1 + $0x20] sm:$0xf]
    %v39 = vld [vmem:[%s1 + $0x24] sm:$0xf]
    %v40 = vld [vmem:[%s1 + $0x28] sm:$0xf]
    %v41 = vld [vmem:[%s1 + $0x2c] sm:$0xf]
    %v42 = vld [vmem:[%s1 + $0x30] sm:$0xf]
    %v43 = vld [vmem:[%s1 + $0x34] sm:$0xf]
    %v44 = vld [vmem:[%s1 + $0x38] sm:$0xf]
    %v45 = vld [vmem:[%s1 + $0x3c] sm:$0xf]
    %v46 = vld [vmem:[%s2] sm:$0x1]
    %v48 = vlaneseq
    %v49 = vshrl.u32 %v48, 7
    %v50 = vsub.s32 0, %v49
    %v51 = vrot.slane %v46, %v50
    %v55 = vunpack.c.l.b16 %v28
    %v56 = vunpack.c.l.b16 %v29
    %v57 = vpack.c.b16 %v56, %v55
    %v75 = vunpack.c.l.b16 %v30
    %v76 = vunpack.c.l.b16 %v31
    %v77 = vunpack.c.l.b16 %v32
    %v78 = vunpack.c.l.b16 %v33
    %v79 = vunpack.c.l.b16 %v34
    %v80 = vunpack.c.l.b16 %v35
    %v81 = vunpack.c.l.b16 %v36
    %v82 = vunpack.c.l.b16 %v37
    %v83 = vunpack.c.l.b16 %v38
    %v84 = vunpack.c.l.b16 %v39
    %v85 = vunpack.c.l.b16 %v40
    %v86 = vunpack.c.l.b16 %v41
    %v87 = vunpack.c.l.b16 %v42
    %v88 = vunpack.c.l.b16 %v43
    %v89 = vunpack.c.l.b16 %v44
    %v90 = vunpack.c.l.b16 %v45
    %v91 = vpack.c.b16 %v76, %v75
    %v92 = vpack.c.b16 %v78, %v77
    %v93 = vpack.c.b16 %v80, %v79
    %v94 = vpack.c.b16 %v82, %v81
    %v95 = vpack.c.b16 %v84, %v83
    %v96 = vpack.c.b16 %v86, %v85
    %v97 = vpack.c.b16 %v88, %v87
    %v98 = vpack.c.b16 %v90, %v89
    %107 = vmatprep.subr.bf16.mxu0 0
    %108 = vmatpush1.bf16.msra.mxu0 %v98
    %109 = vmatprep.subr.bf16.mxu0 0
    %110 = vmatpush1.bf16.msra.mxu0 %v97
    %111 = vmatprep.subr.bf16.mxu0 0
    %112 = vmatpush1.bf16.msra.mxu0 %v96
    %113 = vmatprep.subr.bf16.mxu0 0
    %114 = vmatpush1.bf16.msra.mxu0 %v95
    %115 = vmatprep.subr.bf16.mxu0 0
    %116 = vmatpush1.bf16.msra.mxu0 %v94
    %117 = vmatprep.subr.bf16.mxu0 0
    %118 = vmatpush1.bf16.msra.mxu0 %v93
    %119 = vmatprep.subr.bf16.mxu0 0
    %120 = vmatpush1.bf16.msra.mxu0 %v92
    %121 = vmatprep.subr.bf16.mxu0 0
    %122 = vmatpush1.bf16.msra.mxu0 %v91
    %123 = vmatprep.subr.bf16.mxu0 0
    %124 = vmatpush2.bf16.msra.mxu0 0
    %125 = vmatprep.subr.bf16.mxu0 0
    %126 = vmatpush2.bf16.msra.mxu0 0
    %127 = vmatprep.subr.bf16.mxu0 0
    %128 = vmatpush2.bf16.msra.mxu0 0
    %129 = vmatprep.subr.bf16.mxu0 0
    %130 = vmatpush2.bf16.msra.mxu0 0
    %131 = vmatprep.subr.bf16.mxu0 0
    %132 = vmatpush2.bf16.msra.mxu0 0
    %133 = vmatprep.subr.bf16.mxu0 0
    %134 = vmatpush2.bf16.msra.mxu0 0
    %135 = vmatprep.subr.bf16.mxu0 0
    %136 = vmatpush2.bf16.msra.mxu0 0
    %137 = vmatprep.subr.bf16.mxu0 0
    %138 = vmatpush2.bf16.msra.mxu0 0
    %139 = vmatprep.mubr.bf16.mxu0 0
    %140 = vmatmul.mubr.bf16.gmra.mxu0 %v57
    %v141 = vpop.f32.mrf.mxu0
    %v142 = vadd.f32 %v51, %v141
    %v143 = vpop.f32.mrf.mxu0
    %v144 = vpop.f32.mrf.mxu0
    %v145 = vadd.f32 %v51, %v144
    %v146 = vpop.f32.mrf.mxu0
    %147 = vdwg.mxu0
    %v148 = vmax.f32 %v142, 0.0
    %v149 = vmax.f32 %v145, 0.0
    %v150 = vld [vmem:[%s3] sm:$0xf]
    %v151 = vld [vmem:[%s3 + $0x4] sm:$0xf]
    %v152 = vld [vmem:[%s3 + $0x8] sm:$0xf]
    %v153 = vld [vmem:[%s3 + $0xc] sm:$0xf]
    %v154 = vld [vmem:[%s4] sm:$0x1]
    %v155 = vpack.c.bf16 %v149, %v148
    %v157 = vlaneseq
    %v158 = vshrl.u32 %v157, 7
    %v159 = vsub.s32 0, %v158
    %v160 = vrot.slane %v154, %v159
    %v166 = vunpack.c.l.b16 %v150
    %v167 = vunpack.c.l.b16 %v151
    %v168 = vunpack.c.l.b16 %v152
    %v169 = vunpack.c.l.b16 %v153
    %v170 = vpack.c.b16 %v167, %v166
    %v171 = vpack.c.b16 %v169, %v168
    %vm174 = vcmask 261120
    %v176 = vsel %vm174, %v155, 0
    %178 = vmatprep.subr.bf16.mxu0 0
    %179 = vmatpush1.bf16.msra.mxu0 0
    %180 = vmatprep.subr.bf16.mxu0 0
    %181 = vmatpush1.bf16.msra.mxu0 0
    %182 = vmatprep.subr.bf16.mxu0 0
    %183 = vmatpush1.bf16.msra.mxu0 0
    %184 = vmatprep.subr.bf16.mxu0 0
    %185 = vmatpush1.bf16.msra.mxu0 0
    %186 = vmatprep.subr.bf16.mxu0 0
    %187 = vmatpush1.bf16.msra.mxu0 0
    %188 = vmatprep.subr.bf16.mxu0 0
    %189 = vmatpush1.bf16.msra.mxu0 0
    %190 = vmatprep.subr.bf16.mxu0 0
    %191 = vmatpush1.bf16.msra.mxu0 %v171
    %192 = vmatprep.subr.bf16.mxu0 0
    %193 = vmatpush1.bf16.msra.mxu0 %v170
    %194 = vmatprep.subr.bf16.mxu0 0
    %195 = vmatpush2.bf16.msra.mxu0 0
    %196 = vmatprep.subr.bf16.mxu0 0
    %197 = vmatpush2.bf16.msra.mxu0 0
    %198 = vmatprep.subr.bf16.mxu0 0
    %199 = vmatpush2.bf16.msra.mxu0 0
    %200 = vmatprep.subr.bf16.mxu0 0
    %201 = vmatpush2.bf16.msra.mxu0 0
    %202 = vmatprep.subr.bf16.mxu0 0
    %203 = vmatpush2.bf16.msra.mxu0 0
    %204 = vmatprep.subr.bf16.mxu0 0
    %205 = vmatpush2.bf16.msra.mxu0 0
    %206 = vmatprep.subr.bf16.mxu0 0
    %207 = vmatpush2.bf16.msra.mxu0 0
    %208 = vmatprep.subr.bf16.mxu0 0
    %209 = vmatpush2.bf16.msra.mxu0 0
    %210 = vmatprep.mubr.bf16.mxu0 0
    %211 = vmatmul.mubr.bf16.gmra.mxu0 %v176
    %v212 = vpop.f32.mrf.mxu0
    %v213 = vadd.f32 %v160, %v212
    %v214 = vpop.f32.mrf.mxu0
    %v215 = vpop.f32.mrf.mxu0
    %v216 = vadd.f32 %v160, %v215
    %v217 = vpop.f32.mrf.mxu0
    %218 = vdwg.mxu0
    %v219 = vmax.f32 %v213, 0.0
    %v220 = vmax.f32 %v216, 0.0
    %v221 = vld [vmem:[%s5] sm:$0xf]
    %v222 = vld [vmem:[%s5 + $0x4] sm:$0xf]
    %v223 = vld [vmem:[%s5 + $0x8] sm:$0xf]
    %v224 = vld [vmem:[%s5 + $0xc] sm:$0xf]
    %v225 = vld [vmem:[%s6] sm:$0x1]
    %v226 = vpack.c.bf16 %v220, %v219
    %v228 = vlaneseq
    %v229 = vshrl.u32 %v228, 7
    %v230 = vsub.s32 0, %v229
    %v231 = vrot.slane %v225, %v230
    %v237 = vunpack.c.l.b16 %v221
    %v238 = vunpack.c.l.b16 %v222
    %v239 = vunpack.c.l.b16 %v223
    %v240 = vunpack.c.l.b16 %v224
    %v241 = vpack.c.b16 %v238, %v237
    %v242 = vpack.c.b16 %v240, %v239
    %v246 = vsel %vm174, %v226, 0
    %248 = vmatprep.subr.bf16.mxu0 0
    %249 = vmatpush1.bf16.msra.mxu0 0
    %250 = vmatprep.subr.bf16.mxu0 0
    %251 = vmatpush1.bf16.msra.mxu0 0
    %252 = vmatprep.subr.bf16.mxu0 0
    %253 = vmatpush1.bf16.msra.mxu0 0
    %254 = vmatprep.subr.bf16.mxu0 0
    %255 = vmatpush1.bf16.msra.mxu0 0
    %256 = vmatprep.subr.bf16.mxu0 0
    %257 = vmatpush1.bf16.msra.mxu0 0
    %258 = vmatprep.subr.bf16.mxu0 0
    %259 = vmatpush1.bf16.msra.mxu0 0
    %260 = vmatprep.subr.bf16.mxu0 0
    %261 = vmatpush1.bf16.msra.mxu0 %v242
    %262 = vmatprep.subr.bf16.mxu0 0
    %263 = vmatpush1.bf16.msra.mxu0 %v241
    %264 = vmatprep.subr.bf16.mxu0 0
    %265 = vmatpush2.bf16.msra.mxu0 0
    %266 = vmatprep.subr.bf16.mxu0 0
    %267 = vmatpush2.bf16.msra.mxu0 0
    %268 = vmatprep.subr.bf16.mxu0 0
    %269 = vmatpush2.bf16.msra.mxu0 0
    %270 = vmatprep.subr.bf16.mxu0 0
    %271 = vmatpush2.bf16.msra.mxu0 0
    %272 = vmatprep.subr.bf16.mxu0 0
    %273 = vmatpush2.bf16.msra.mxu0 0
    %274 = vmatprep.subr.bf16.mxu0 0
    %275 = vmatpush2.bf16.msra.mxu0 0
    %276 = vmatprep.subr.bf16.mxu0 0
    %277 = vmatpush2.bf16.msra.mxu0 0
    %278 = vmatprep.subr.bf16.mxu0 0
    %279 = vmatpush2.bf16.msra.mxu0 0
    %280 = vmatprep.mubr.bf16.mxu0 0
    %281 = vmatmul.mubr.bf16.gmra.mxu0 %v246
    %v282 = vpop.f32.mrf.mxu0
    %v283 = vadd.f32 %v231, %v282
    %v284 = vpop.f32.mrf.mxu0
    %v285 = vpop.f32.mrf.mxu0
    %v286 = vadd.f32 %v231, %v285
    %v287 = vpop.f32.mrf.mxu0
    %288 = vdwg.mxu0
    %289 = vst [vmem:[#allocation2] sm:$0xff] %v283
    %290 = vst [vmem:[#allocation2 + $0x8] sm:$0xff] %v286
    // Predicated region
    $region30: #{tpu_custom_call.1} parent=1 // pred_check
      _
    $region31: #{tpu_custom_call.1} parent=1 // pred_check_branch
      %292 = sbr.rel (0) target = $region33
    $region32: #{tpu_custom_call.1} parent=1 // pred_region
      %s294 = ssub.s32 256, 256
      %295 = vsyncadd [#allocation3], %s294
      %s296 = sshll.u32 [#allocation2], 4
      %s297 = int_to_ptr.vmem [resolvable:$true] %s296
      %302 = dma.vmem_to_hbm [thread:$0]  %s297, 256, %s7, [#allocation3], 128, 128, 8
    $region33: #{tpu_custom_call.1} parent=1 // pred_fallthru
      _
    // Predicated region
    $region34: #{tpu_custom_call.1} parent=1 // pred_check
      _
    $region35: #{tpu_custom_call.1} parent=1 // pred_check_branch
      %304 = sbr.rel (0) target = $region37
    $region36: #{tpu_custom_call.1} parent=1 // pred_region
      %305 = dma.done [#allocation3], 256
    $region37: #{tpu_custom_call.1} parent=1 // pred_fallthru
      _
    %306 = vsyncpa [#allocation3], 1

</llo_original>
